<compile_context>
chip_gen: v7x
topology: tpu7x:2x2x1
jax: 0.10.0
libtpu: 0.0.40
codegen_flags: <defaults>
</compile_context>

<pallas_src>
import functools

import jax
import jax.numpy as jnp
from jax.experimental import pallas as pl
from jax.experimental.pallas import tpu as pltpu


def _traj_loss_kernel(pt_ref, tt_ref, pr_ref, tr_ref, u_ref, out_ref, *,
                      B, T, R,
                      translation_weight, rotation_weight, trajectory_weight,
                      smoothness_weight, diversity_weight):
    f32 = jnp.float32

    # ---- translation MSE + trajectory MSE (stacked cumsum-as-MXU-matmul) ---
    # pt/tt are coordinate-major flat slabs: row = c*B + b, lane = time.
    pt = pt_ref[...].astype(f32)                 # (3B, T)
    tt = tt_ref[...].astype(f32)                 # (3B, T)
    d = pt - tt                                  # reused by both terms
    # cumsum over time == d @ U with U[s, t] = 1 for s <= t (built in wrapper)
    cs = jnp.dot(d, u_ref[...],
                 precision=jax.lax.Precision.HIGHEST,
                 preferred_element_type=f32)     # (3B, T)
    inv_3bt = f32(1.0 / (3 * B * T))
    # Pre-weighted elementwise accumulator -> one cross-lane reduction.
    wacc = ((f32(translation_weight) * inv_3bt) * (d * d)
            + (f32(trajectory_weight) * inv_3bt) * (cs * cs))
    total = jnp.sum(wacc)

    # ---- rotation (quaternion) loss -----------------------------------------
    # Loaded here (not at kernel top) to keep the f32 copies' live range short.
    pr = pr_ref[...].astype(f32)                 # (R, B, T)
    tr = tr_ref[...].astype(f32)                 # (R, B, T)
    # F.normalize clamp: max(||x||, 1e-12) == sqrt(max(||x||^2, 1e-24))
    eps2 = f32(1e-24)
    ss_p = pr[0] * pr[0]
    ss_t = tr[0] * tr[0]
    pdt = pr[0] * tr[0]
    for c in range(1, R):
        ss_p += pr[c] * pr[c]
        ss_t += tr[c] * tr[c]
        pdt += pr[c] * tr[c]
    inv_p = jax.lax.rsqrt(jnp.maximum(ss_p, eps2))   # EUP
    inv_t = jax.lax.rsqrt(jnp.maximum(ss_t, eps2))
    dot = jnp.clip(pdt * inv_p * inv_t, -1.0, 1.0)   # (B, T)
    total += (f32(rotation_weight) / f32(B * T)) * jnp.sum(1.0 - jnp.abs(dot))

    # ---- smoothness: mean L2-norm of second temporal differences ------------
    # TODO(synk): when T is a multiple of 128, replace the lane-offset slices
    # below with pltpu.roll shifts + an iota mask to avoid (B, T-2) relayouts.
    if T > 2:
        nsq = None
        for c in range(3):
            x_c = pt_ref[pl.ds(c * B, B), :].astype(f32)             # (B, T)
            a_c = x_c[:, 2:] - 2.0 * x_c[:, 1:-1] + x_c[:, :-2]      # (B, T-2)
            nsq = a_c * a_c if nsq is None else nsq + a_c * a_c
        total += ((f32(smoothness_weight) / f32(B * (T - 2)))
                  * jnp.sum(jnp.sqrt(nsq)))
    # else: the PyTorch branch sets smoothness to exactly 0.0 -> add nothing.

    # ---- diversity: 1 / (mean unbiased std over time + 1e-6) ----------------
    if T > 1:
        inv_T = f32(1.0 / T)
        inv_Tm1 = f32(1.0 / (T - 1))
        m = jnp.sum(pt, axis=1, keepdims=True) * inv_T               # (3B, 1)
        xc = pt - m
        var = jnp.sum(xc * xc, axis=1, keepdims=True) * inv_Tm1      # (3B, 1)
        motion_std = jnp.sum(jnp.sqrt(var)) * f32(1.0 / (3 * B))
    else:
        motion_std = f32(jnp.nan)   # matches torch.std(ddof=1) at T == 1
    total += f32(diversity_weight) / (motion_std + f32(1e-6))

    out_ref[...] = jnp.full((1, 1), total, dtype=f32)


def trajectory_aware_arvr_loss(predictions, targets, *,
                               translation_weight=1.0, rotation_weight=1.0,
                               trajectory_weight=0.2, smoothness_weight=0.1,
                               diversity_weight=0.05):
    """Pallas wrapper — predictions/targets: [B, T, D] with D >= 4 (3 trans + rot)."""
    B, T, D = predictions.shape
    R = D - 3
    assert R >= 1, "need at least one rotation component"

    # Lane-dense, coordinate-major flat slabs for translation (rows = c*B + b,
    # lanes = time): feeds whole-slab VPU ops and the stacked cumsum matmul.
    pt = jnp.transpose(predictions[:, :, :3], (2, 0, 1)).reshape(3 * B, T)
    tt = jnp.transpose(targets[:, :, :3], (2, 0, 1)).reshape(3 * B, T)
    # Rotation stays (R, B, T): only per-component elementwise work needs it,
    # and leading-index access avoids sublane-offset slicing in the kernel.
    pr = jnp.transpose(predictions[:, :, 3:], (2, 0, 1))
    tr = jnp.transpose(targets[:, :, 3:], (2, 0, 1))

    # Hoisted out of the kernel: U[s, t] = 1 if s <= t (cumsum matrix).
    upper = jnp.triu(jnp.ones((T, T), jnp.float32))

    kernel = functools.partial(
        _traj_loss_kernel,
        B=B, T=T, R=R,
        translation_weight=float(translation_weight),
        rotation_weight=float(rotation_weight),
        trajectory_weight=float(trajectory_weight),
        smoothness_weight=float(smoothness_weight),
        diversity_weight=float(diversity_weight),
    )

    # --- explicit VMEM budget: v7x has 64 MiB/TC, keep >= 16 MiB headroom ----
    itemsize = jnp.dtype(predictions.dtype).itemsize
    pose_elems = 2 * (3 + R) * B * T
    in_bytes = pose_elems * itemsize + T * T * 4
    f32_copy_bytes = pose_elems * 4 if itemsize < 4 else 0   # in-kernel casts
    temp_bytes = (3 * 3 * B * T + 8 * B * T) * 4             # d, cs, wacc, rot temps
    vmem_bytes = in_bytes + f32_copy_bytes + temp_bytes
    assert vmem_bytes < 40 * 1024 * 1024, (
        f"single-block footprint {vmem_bytes} B too large; tile over batch "
        "and block the cumsum matrix over time (see TODO above)")
    vmem_limit = int(min(48 * 1024 * 1024, max(16 * 1024 * 1024, 2 * vmem_bytes)))

    cost = pl.CostEstimate(
        flops=2 * 3 * B * T * T + 80 * B * T * D,
        transcendentals=2 * B * T + B * max(T - 2, 0) + 3 * B,
        bytes_accessed=in_bytes + 4,
    )

    out = pl.pallas_call(
        kernel,
        out_shape=jax.ShapeDtypeStruct((1, 1), jnp.float32),
        in_specs=[pl.BlockSpec((3 * B, T), lambda: (0, 0)),
                  pl.BlockSpec((3 * B, T), lambda: (0, 0)),
                  pl.BlockSpec((R, B, T), lambda: (0, 0, 0)),
                  pl.BlockSpec((R, B, T), lambda: (0, 0, 0)),
                  pl.BlockSpec((T, T), lambda: (0, 0))],
        out_specs=pl.BlockSpec((1, 1), lambda: (0, 0)),
        compiler_params=pltpu.CompilerParams(vmem_limit_bytes=vmem_limit),
        cost_estimate=cost,
    )(pt, tt, pr, tr, upper)
    return out[0, 0]


def _reference_loss(predictions, targets, *,
                    translation_weight=1.0, rotation_weight=1.0,
                    trajectory_weight=0.2, smoothness_weight=0.1,
                    diversity_weight=0.05):
    """Plain-JAX mirror of the PyTorch forward (for correctness checking)."""
    pred_trans = predictions[:, :, :3]
    pred_rot = predictions[:, :, 3:]
    targ_trans = targets[:, :, :3]
    targ_rot = targets[:, :, 3:]
    trans_loss = jnp.mean((pred_trans - targ_trans) ** 2)
    eps = 1e-12
    pn = pred_rot / jnp.maximum(
        jnp.linalg.norm(pred_rot, axis=-1, keepdims=True), eps)
    tn = targ_rot / jnp.maximum(
        jnp.linalg.norm(targ_rot, axis=-1, keepdims=True), eps)
    dot = jnp.clip(jnp.sum(pn * tn, axis=-1), -1.0, 1.0)
    rot_loss = jnp.mean(1.0 - jnp.abs(dot))
    trajectory_loss = jnp.mean(
        (jnp.cumsum(pred_trans, axis=1) - jnp.cumsum(targ_trans, axis=1)) ** 2)
    if predictions.shape[1] > 2:
        vel = pred_trans[:, 1:] - pred_trans[:, :-1]
        acc = vel[:, 1:] - vel[:, :-1]
        smoothness_loss = jnp.mean(jnp.linalg.norm(acc, axis=-1))
    else:
        smoothness_loss = jnp.float32(0.0)
    motion_std = jnp.mean(jnp.std(pred_trans, axis=1, ddof=1))
    diversity_loss = 1.0 / (motion_std + 1e-6)
    return (translation_weight * trans_loss + rotation_weight * rot_loss
            + trajectory_weight * trajectory_loss
            + smoothness_weight * smoothness_loss
            + diversity_weight * diversity_loss)


if __name__ == "__main__":
    # Shapes implied by the forward: [batch, seq, 7] (3 translation + 4 quat)
    B, T, D = 2, 8, 7
    key = jax.random.PRNGKey(0)
    kp, kt = jax.random.split(key)
    predictions = jax.random.normal(kp, (B, T, D), dtype=jnp.float32)
    targets = jax.random.normal(kt, (B, T, D), dtype=jnp.float32)

    loss = jax.block_until_ready(trajectory_aware_arvr_loss(predictions, targets))
    ref = jax.block_until_ready(_reference_loss(predictions, targets))
    assert jnp.allclose(loss, ref, rtol=1e-4, atol=1e-4), (loss, ref)

    print("KERNEL_OK")
</pallas_src>

<mosaic_0001>
module attributes {stable_mosaic.version = 11 : i64} {
  func.func @_traj_loss_kernel(%arg0: memref<6x8xf32, #tpu.memory_space<vmem>>, %arg1: memref<6x8xf32, #tpu.memory_space<vmem>>, %arg2: memref<4x2x8xf32, #tpu.memory_space<vmem>>, %arg3: memref<4x2x8xf32, #tpu.memory_space<vmem>>, %arg4: memref<8x8xf32, #tpu.memory_space<vmem>>, %arg5: memref<1x1xf32, #tpu.memory_space<vmem>>) attributes {dimension_semantics = [], scalar_prefetch = 0 : i64, scratch_operands = 0 : i64, tpu.core_type = #tpu.core_type<tc>} {
    %c0 = arith.constant 0 : index
    %c0_0 = arith.constant 0 : index
    %0 = vector.load %arg0[%c0, %c0_0] : memref<6x8xf32, #tpu.memory_space<vmem>>, vector<6x8xf32>
    %c0_1 = arith.constant 0 : index
    %c0_2 = arith.constant 0 : index
    %1 = vector.load %arg1[%c0_1, %c0_2] : memref<6x8xf32, #tpu.memory_space<vmem>>, vector<6x8xf32>
    %2 = arith.subf %0, %1 : vector<6x8xf32>
    %c0_3 = arith.constant 0 : index
    %c0_4 = arith.constant 0 : index
    %3 = vector.load %arg4[%c0_3, %c0_4] : memref<8x8xf32, #tpu.memory_space<vmem>>, vector<8x8xf32>
    %cst = arith.constant dense<0.000000e+00> : vector<6x8xf32>
    %4 = tpu.matmul %2, %3, %cst {dimension_numbers = #tpu.dot_dimension_numbers<[1], [0], [0], [1], [0, 0, 1, 1], [], []>, precision = #tpu.contract_precision<fp32>} : vector<6x8xf32>, vector<8x8xf32>, vector<6x8xf32> -> vector<6x8xf32>
    %cst_5 = arith.constant 1.000000e+00 : f32
    %cst_6 = arith.constant 0.020833334 : f32
    %5 = arith.mulf %cst_5, %cst_6 : f32
    %6 = arith.mulf %2, %2 : vector<6x8xf32>
    %7 = vector.broadcast %5 : f32 to vector<6x8xf32>
    %8 = arith.mulf %7, %6 : vector<6x8xf32>
    %cst_7 = arith.constant 2.000000e-01 : f32
    %cst_8 = arith.constant 0.020833334 : f32
    %9 = arith.mulf %cst_7, %cst_8 : f32
    %10 = arith.mulf %4, %4 : vector<6x8xf32>
    %11 = vector.broadcast %9 : f32 to vector<6x8xf32>
    %12 = arith.mulf %11, %10 : vector<6x8xf32>
    %13 = arith.addf %8, %12 : vector<6x8xf32>
    %14 = vector.shape_cast %13 : vector<6x8xf32> to vector<1x6x8xf32>
    %cst_9 = arith.constant dense<0.000000e+00> : vector<1xf32>
    %15 = vector.multi_reduction <add>, %14, %cst_9 [1, 2] : vector<1x6x8xf32> to vector<1xf32>
    %16 = vector.shape_cast %15 : vector<1xf32> to vector<1x1x1xf32>
    %17 = vector.extract %16[0, 0, 0] : f32 from vector<1x1x1xf32>
    %c0_10 = arith.constant 0 : index
    %c0_11 = arith.constant 0 : index
    %c0_12 = arith.constant 0 : index
    %18 = vector.load %arg2[%c0_10, %c0_11, %c0_12] : memref<4x2x8xf32, #tpu.memory_space<vmem>>, vector<4x2x8xf32>
    %c0_13 = arith.constant 0 : index
    %c0_14 = arith.constant 0 : index
    %c0_15 = arith.constant 0 : index
    %19 = vector.load %arg3[%c0_13, %c0_14, %c0_15] : memref<4x2x8xf32, #tpu.memory_space<vmem>>, vector<4x2x8xf32>
    %20 = vector.extract_strided_slice %18 {offsets = [0, 0, 0], sizes = [1, 2, 8], strides = [1, 1, 1]} : vector<4x2x8xf32> to vector<1x2x8xf32>
    %21 = vector.shape_cast %20 : vector<1x2x8xf32> to vector<2x8xf32>
    %22 = vector.extract_strided_slice %18 {offsets = [0, 0, 0], sizes = [1, 2, 8], strides = [1, 1, 1]} : vector<4x2x8xf32> to vector<1x2x8xf32>
    %23 = vector.shape_cast %22 : vector<1x2x8xf32> to vector<2x8xf32>
    %24 = arith.mulf %21, %23 : vector<2x8xf32>
    %25 = vector.extract_strided_slice %19 {offsets = [0, 0, 0], sizes = [1, 2, 8], strides = [1, 1, 1]} : vector<4x2x8xf32> to vector<1x2x8xf32>
    %26 = vector.shape_cast %25 : vector<1x2x8xf32> to vector<2x8xf32>
    %27 = vector.extract_strided_slice %19 {offsets = [0, 0, 0], sizes = [1, 2, 8], strides = [1, 1, 1]} : vector<4x2x8xf32> to vector<1x2x8xf32>
    %28 = vector.shape_cast %27 : vector<1x2x8xf32> to vector<2x8xf32>
    %29 = arith.mulf %26, %28 : vector<2x8xf32>
    %30 = vector.extract_strided_slice %18 {offsets = [0, 0, 0], sizes = [1, 2, 8], strides = [1, 1, 1]} : vector<4x2x8xf32> to vector<1x2x8xf32>
    %31 = vector.shape_cast %30 : vector<1x2x8xf32> to vector<2x8xf32>
    %32 = vector.extract_strided_slice %19 {offsets = [0, 0, 0], sizes = [1, 2, 8], strides = [1, 1, 1]} : vector<4x2x8xf32> to vector<1x2x8xf32>
    %33 = vector.shape_cast %32 : vector<1x2x8xf32> to vector<2x8xf32>
    %34 = arith.mulf %31, %33 : vector<2x8xf32>
    %35 = vector.extract_strided_slice %18 {offsets = [1, 0, 0], sizes = [1, 2, 8], strides = [1, 1, 1]} : vector<4x2x8xf32> to vector<1x2x8xf32>
    %36 = vector.shape_cast %35 : vector<1x2x8xf32> to vector<2x8xf32>
    %37 = vector.extract_strided_slice %18 {offsets = [1, 0, 0], sizes = [1, 2, 8], strides = [1, 1, 1]} : vector<4x2x8xf32> to vector<1x2x8xf32>
    %38 = vector.shape_cast %37 : vector<1x2x8xf32> to vector<2x8xf32>
    %39 = arith.mulf %36, %38 : vector<2x8xf32>
    %40 = arith.addf %24, %39 : vector<2x8xf32>
    %41 = vector.extract_strided_slice %19 {offsets = [1, 0, 0], sizes = [1, 2, 8], strides = [1, 1, 1]} : vector<4x2x8xf32> to vector<1x2x8xf32>
    %42 = vector.shape_cast %41 : vector<1x2x8xf32> to vector<2x8xf32>
    %43 = vector.extract_strided_slice %19 {offsets = [1, 0, 0], sizes = [1, 2, 8], strides = [1, 1, 1]} : vector<4x2x8xf32> to vector<1x2x8xf32>
    %44 = vector.shape_cast %43 : vector<1x2x8xf32> to vector<2x8xf32>
    %45 = arith.mulf %42, %44 : vector<2x8xf32>
    %46 = arith.addf %29, %45 : vector<2x8xf32>
    %47 = vector.extract_strided_slice %18 {offsets = [1, 0, 0], sizes = [1, 2, 8], strides = [1, 1, 1]} : vector<4x2x8xf32> to vector<1x2x8xf32>
    %48 = vector.shape_cast %47 : vector<1x2x8xf32> to vector<2x8xf32>
    %49 = vector.extract_strided_slice %19 {offsets = [1, 0, 0], sizes = [1, 2, 8], strides = [1, 1, 1]} : vector<4x2x8xf32> to vector<1x2x8xf32>
    %50 = vector.shape_cast %49 : vector<1x2x8xf32> to vector<2x8xf32>
    %51 = arith.mulf %48, %50 : vector<2x8xf32>
    %52 = arith.addf %34, %51 : vector<2x8xf32>
    %53 = vector.extract_strided_slice %18 {offsets = [2, 0, 0], sizes = [1, 2, 8], strides = [1, 1, 1]} : vector<4x2x8xf32> to vector<1x2x8xf32>
    %54 = vector.shape_cast %53 : vector<1x2x8xf32> to vector<2x8xf32>
    %55 = vector.extract_strided_slice %18 {offsets = [2, 0, 0], sizes = [1, 2, 8], strides = [1, 1, 1]} : vector<4x2x8xf32> to vector<1x2x8xf32>
    %56 = vector.shape_cast %55 : vector<1x2x8xf32> to vector<2x8xf32>
    %57 = arith.mulf %54, %56 : vector<2x8xf32>
    %58 = arith.addf %40, %57 : vector<2x8xf32>
    %59 = vector.extract_strided_slice %19 {offsets = [2, 0, 0], sizes = [1, 2, 8], strides = [1, 1, 1]} : vector<4x2x8xf32> to vector<1x2x8xf32>
    %60 = vector.shape_cast %59 : vector<1x2x8xf32> to vector<2x8xf32>
    %61 = vector.extract_strided_slice %19 {offsets = [2, 0, 0], sizes = [1, 2, 8], strides = [1, 1, 1]} : vector<4x2x8xf32> to vector<1x2x8xf32>
    %62 = vector.shape_cast %61 : vector<1x2x8xf32> to vector<2x8xf32>
    %63 = arith.mulf %60, %62 : vector<2x8xf32>
    %64 = arith.addf %46, %63 : vector<2x8xf32>
    %65 = vector.extract_strided_slice %18 {offsets = [2, 0, 0], sizes = [1, 2, 8], strides = [1, 1, 1]} : vector<4x2x8xf32> to vector<1x2x8xf32>
    %66 = vector.shape_cast %65 : vector<1x2x8xf32> to vector<2x8xf32>
    %67 = vector.extract_strided_slice %19 {offsets = [2, 0, 0], sizes = [1, 2, 8], strides = [1, 1, 1]} : vector<4x2x8xf32> to vector<1x2x8xf32>
    %68 = vector.shape_cast %67 : vector<1x2x8xf32> to vector<2x8xf32>
    %69 = arith.mulf %66, %68 : vector<2x8xf32>
    %70 = arith.addf %52, %69 : vector<2x8xf32>
    %71 = vector.extract_strided_slice %18 {offsets = [3, 0, 0], sizes = [1, 2, 8], strides = [1, 1, 1]} : vector<4x2x8xf32> to vector<1x2x8xf32>
    %72 = vector.shape_cast %71 : vector<1x2x8xf32> to vector<2x8xf32>
    %73 = vector.extract_strided_slice %18 {offsets = [3, 0, 0], sizes = [1, 2, 8], strides = [1, 1, 1]} : vector<4x2x8xf32> to vector<1x2x8xf32>
    %74 = vector.shape_cast %73 : vector<1x2x8xf32> to vector<2x8xf32>
    %75 = arith.mulf %72, %74 : vector<2x8xf32>
    %76 = arith.addf %58, %75 : vector<2x8xf32>
    %77 = vector.extract_strided_slice %19 {offsets = [3, 0, 0], sizes = [1, 2, 8], strides = [1, 1, 1]} : vector<4x2x8xf32> to vector<1x2x8xf32>
    %78 = vector.shape_cast %77 : vector<1x2x8xf32> to vector<2x8xf32>
    %79 = vector.extract_strided_slice %19 {offsets = [3, 0, 0], sizes = [1, 2, 8], strides = [1, 1, 1]} : vector<4x2x8xf32> to vector<1x2x8xf32>
    %80 = vector.shape_cast %79 : vector<1x2x8xf32> to vector<2x8xf32>
    %81 = arith.mulf %78, %80 : vector<2x8xf32>
    %82 = arith.addf %64, %81 : vector<2x8xf32>
    %83 = vector.extract_strided_slice %18 {offsets = [3, 0, 0], sizes = [1, 2, 8], strides = [1, 1, 1]} : vector<4x2x8xf32> to vector<1x2x8xf32>
    %84 = vector.shape_cast %83 : vector<1x2x8xf32> to vector<2x8xf32>
    %85 = vector.extract_strided_slice %19 {offsets = [3, 0, 0], sizes = [1, 2, 8], strides = [1, 1, 1]} : vector<4x2x8xf32> to vector<1x2x8xf32>
    %86 = vector.shape_cast %85 : vector<1x2x8xf32> to vector<2x8xf32>
    %87 = arith.mulf %84, %86 : vector<2x8xf32>
    %88 = arith.addf %70, %87 : vector<2x8xf32>
    %cst_16 = arith.constant 1.000000e-24 : f32
    %89 = vector.broadcast %cst_16 : f32 to vector<2x8xf32>
    %90 = arith.maximumf %76, %89 : vector<2x8xf32>
    %91 = math.rsqrt %90 : vector<2x8xf32>
    %cst_17 = arith.constant 1.000000e-24 : f32
    %92 = vector.broadcast %cst_17 : f32 to vector<2x8xf32>
    %93 = arith.maximumf %82, %92 : vector<2x8xf32>
    %94 = math.rsqrt %93 : vector<2x8xf32>
    %95 = arith.mulf %88, %91 : vector<2x8xf32>
    %96 = arith.mulf %95, %94 : vector<2x8xf32>
    %cst_18 = arith.constant -1.000000e+00 : f32
    %cst_19 = arith.constant 1.000000e+00 : f32
    %97 = vector.broadcast %cst_18 : f32 to vector<2x8xf32>
    %98 = arith.maximumf %97, %96 : vector<2x8xf32>
    %99 = vector.broadcast %cst_19 : f32 to vector<2x8xf32>
    %100 = arith.minimumf %99, %98 : vector<2x8xf32>
    %cst_20 = arith.constant 1.000000e+00 : f32
    %cst_21 = arith.constant 1.600000e+01 : f32
    %101 = arith.divf %cst_20, %cst_21 : f32
    %102 = math.absf %100 : vector<2x8xf32>
    %cst_22 = arith.constant 1.000000e+00 : f32
    %103 = vector.broadcast %cst_22 : f32 to vector<2x8xf32>
    %104 = arith.subf %103, %102 : vector<2x8xf32>
    %105 = vector.shape_cast %104 : vector<2x8xf32> to vector<1x2x8xf32>
    %cst_23 = arith.constant dense<0.000000e+00> : vector<1xf32>
    %106 = vector.multi_reduction <add>, %105, %cst_23 [1, 2] : vector<1x2x8xf32> to vector<1xf32>
    %107 = vector.shape_cast %106 : vector<1xf32> to vector<1x1x1xf32>
    %108 = vector.extract %107[0, 0, 0] : f32 from vector<1x1x1xf32>
    %109 = arith.mulf %101, %108 : f32
    %110 = arith.addf %17, %109 : f32
    %c0_24 = arith.constant 0 : index
    %c0_25 = arith.constant 0 : index
    %111 = vector.load %arg0[%c0_24, %c0_25] : memref<6x8xf32, #tpu.memory_space<vmem>>, vector<2x8xf32>
    %112 = vector.extract_strided_slice %111 {offsets = [0, 2], sizes = [2, 6], strides = [1, 1]} : vector<2x8xf32> to vector<2x6xf32>
    %113 = vector.extract_strided_slice %111 {offsets = [0, 1], sizes = [2, 6], strides = [1, 1]} : vector<2x8xf32> to vector<2x6xf32>
    %cst_26 = arith.constant 2.000000e+00 : f32
    %114 = vector.broadcast %cst_26 : f32 to vector<2x6xf32>
    %115 = arith.mulf %114, %113 : vector<2x6xf32>
    %116 = arith.subf %112, %115 : vector<2x6xf32>
    %117 = vector.extract_strided_slice %111 {offsets = [0, 0], sizes = [2, 6], strides = [1, 1]} : vector<2x8xf32> to vector<2x6xf32>
    %118 = arith.addf %116, %117 : vector<2x6xf32>
    %119 = arith.mulf %118, %118 : vector<2x6xf32>
    %c2 = arith.constant 2 : index
    %c0_27 = arith.constant 0 : index
    %120 = vector.load %arg0[%c2, %c0_27] : memref<6x8xf32, #tpu.memory_space<vmem>>, vector<2x8xf32>
    %121 = vector.extract_strided_slice %120 {offsets = [0, 2], sizes = [2, 6], strides = [1, 1]} : vector<2x8xf32> to vector<2x6xf32>
    %122 = vector.extract_strided_slice %120 {offsets = [0, 1], sizes = [2, 6], strides = [1, 1]} : vector<2x8xf32> to vector<2x6xf32>
    %cst_28 = arith.constant 2.000000e+00 : f32
    %123 = vector.broadcast %cst_28 : f32 to vector<2x6xf32>
    %124 = arith.mulf %123, %122 : vector<2x6xf32>
    %125 = arith.subf %121, %124 : vector<2x6xf32>
    %126 = vector.extract_strided_slice %120 {offsets = [0, 0], sizes = [2, 6], strides = [1, 1]} : vector<2x8xf32> to vector<2x6xf32>
    %127 = arith.addf %125, %126 : vector<2x6xf32>
    %128 = arith.mulf %127, %127 : vector<2x6xf32>
    %129 = arith.addf %119, %128 : vector<2x6xf32>
    %c4 = arith.constant 4 : index
    %c0_29 = arith.constant 0 : index
    %130 = vector.load %arg0[%c4, %c0_29] : memref<6x8xf32, #tpu.memory_space<vmem>>, vector<2x8xf32>
    %131 = vector.extract_strided_slice %130 {offsets = [0, 2], sizes = [2, 6], strides = [1, 1]} : vector<2x8xf32> to vector<2x6xf32>
    %132 = vector.extract_strided_slice %130 {offsets = [0, 1], sizes = [2, 6], strides = [1, 1]} : vector<2x8xf32> to vector<2x6xf32>
    %cst_30 = arith.constant 2.000000e+00 : f32
    %133 = vector.broadcast %cst_30 : f32 to vector<2x6xf32>
    %134 = arith.mulf %133, %132 : vector<2x6xf32>
    %135 = arith.subf %131, %134 : vector<2x6xf32>
    %136 = vector.extract_strided_slice %130 {offsets = [0, 0], sizes = [2, 6], strides = [1, 1]} : vector<2x8xf32> to vector<2x6xf32>
    %137 = arith.addf %135, %136 : vector<2x6xf32>
    %138 = arith.mulf %137, %137 : vector<2x6xf32>
    %139 = arith.addf %129, %138 : vector<2x6xf32>
    %cst_31 = arith.constant 1.000000e-01 : f32
    %cst_32 = arith.constant 1.200000e+01 : f32
    %140 = arith.divf %cst_31, %cst_32 : f32
    %141 = math.sqrt %139 : vector<2x6xf32>
    %142 = vector.shape_cast %141 : vector<2x6xf32> to vector<1x2x6xf32>
    %cst_33 = arith.constant dense<0.000000e+00> : vector<1xf32>
    %143 = vector.multi_reduction <add>, %142, %cst_33 [1, 2] : vector<1x2x6xf32> to vector<1xf32>
    %144 = vector.shape_cast %143 : vector<1xf32> to vector<1x1x1xf32>
    %145 = vector.extract %144[0, 0, 0] : f32 from vector<1x1x1xf32>
    %146 = arith.mulf %140, %145 : f32
    %147 = arith.addf %110, %146 : f32
    %cst_34 = arith.constant dense<0.000000e+00> : vector<6xf32>
    %148 = vector.multi_reduction <add>, %0, %cst_34 [1] : vector<6x8xf32> to vector<6xf32>
    %149 = vector.shape_cast %148 : vector<6xf32> to vector<6x1xf32>
    %cst_35 = arith.constant 1.250000e-01 : f32
    %150 = vector.broadcast %cst_35 : f32 to vector<6x1xf32>
    %151 = arith.mulf %149, %150 : vector<6x1xf32>
    %152 = vector.broadcast %151 : vector<6x1xf32> to vector<6x8xf32>
    %153 = arith.subf %0, %152 : vector<6x8xf32>
    %154 = arith.mulf %153, %153 : vector<6x8xf32>
    %cst_36 = arith.constant dense<0.000000e+00> : vector<6xf32>
    %155 = vector.multi_reduction <add>, %154, %cst_36 [1] : vector<6x8xf32> to vector<6xf32>
    %156 = vector.shape_cast %155 : vector<6xf32> to vector<6x1xf32>
    %cst_37 = arith.constant 0.142857149 : f32
    %157 = vector.broadcast %cst_37 : f32 to vector<6x1xf32>
    %158 = arith.mulf %156, %157 : vector<6x1xf32>
    %159 = math.sqrt %158 : vector<6x1xf32>
    %160 = vector.shape_cast %159 : vector<6x1xf32> to vector<1x6x1xf32>
    %cst_38 = arith.constant dense<0.000000e+00> : vector<1xf32>
    %161 = vector.multi_reduction <add>, %160, %cst_38 [1, 2] : vector<1x6x1xf32> to vector<1xf32>
    %162 = vector.shape_cast %161 : vector<1xf32> to vector<1x1x1xf32>
    %163 = vector.extract %162[0, 0, 0] : f32 from vector<1x1x1xf32>
    %cst_39 = arith.constant 0.166666672 : f32
    %164 = arith.mulf %163, %cst_39 : f32
    %cst_40 = arith.constant 9.99999997E-7 : f32
    %165 = arith.addf %164, %cst_40 : f32
    %cst_41 = arith.constant 5.000000e-02 : f32
    %166 = arith.divf %cst_41, %165 : f32
    %167 = arith.addf %147, %166 : f32
    %168 = vector.broadcast %167 : f32 to vector<1x1xf32>
    %c0_42 = arith.constant 0 : index
    %c0_43 = arith.constant 0 : index
    %169 = vector.load %arg5[%c0_42, %c0_43] : memref<1x1xf32, #tpu.memory_space<vmem>>, vector<1x1xf32>
    tpu.vector_store %arg5[%c0_42, %c0_43], %168 {strides = array<i32>} : memref<1x1xf32, #tpu.memory_space<vmem>>, vector<1x1xf32>,
    return
  }
}

</mosaic_0001>

<llo_original>
// kernel: tpu_custom_call.1
$region0: #{tpu_custom_call.1}
  #allocation0 [shape = 'u32[]', space=smem, size = 0x4, offset = 0x4, fixed_abs, tag = 'smem constant byte address 0x4 - core index']
  #allocation1 [shape = 'u32[144,128]{1,0:T(1,128)}', space=vmem, size = 0x12000, scoped, tag = 'internal scratch']
  %s0 = inlined_call_operand.hbm [shape: f32[6,8], index: 0, kind: input, shape index: {}]
  %s1 = inlined_call_operand.hbm [shape: f32[6,8], index: 1, kind: input, shape index: {}]
  %s2 = inlined_call_operand.hbm [shape: f32[4,2,8], index: 2, kind: input, shape index: {}]
  %s3 = inlined_call_operand.vmem [shape: f32[4,2,8], index: 3, kind: input, shape index: {}]
  %s4 = inlined_call_operand.hbm [shape: f32[8,8], index: 4, kind: input, shape index: {}]
  %s5 = inlined_call_operand.hbm [shape: f32[1,1], index: 5, kind: output, shape index: {}]
  %s6 = sld [smem:[#allocation0]]
  $region46: #{tpu_custom_call.1} parent=0
    _
  %s8 = ssub.s32 1, %s6
  %s9 = scalar_select 0, %s8, %s6
  $region1: #{tpu_custom_call.1} parent=0
    #allocation2 [shape = 'u8[4096]{0}', space=vmem, size = 0x1000, scoped, tag = 'input window, operand 0, single buffered']
    #allocation3 [shape = 's32[1]{0}', space=sflag, size = 0x4, scoped, tag = 'scoped memory for tpu_custom_call.1']
    #allocation4 [shape = 's32[1]{0}', space=sflag, size = 0x4, scoped, tag = 'scoped memory for tpu_custom_call.1']
    #allocation5 [shape = 'u8[4096]{0}', space=vmem, size = 0x1000, scoped, tag = 'input window, operand 1, single buffered']
    #allocation6 [shape = 's32[1]{0}', space=sflag, size = 0x4, scoped, tag = 'scoped memory for tpu_custom_call.1']
    #allocation7 [shape = 'u8[4096]{0}', space=vmem, size = 0x1000, scoped, tag = 'input window, operand 2, single buffered']
    #allocation8 [shape = 'u8[4096]{0}', space=vmem, size = 0x1000, scoped, tag = 'input window, operand 4, single buffered']
    #allocation9 [shape = 's32[1]{0}', space=sflag, size = 0x4, scoped, tag = 'scoped memory for tpu_custom_call.1']
    #allocation10 [shape = 'u8[512]{0}', space=vmem, size = 0x400, scoped, tag = 'output window, operand 0, single buffered']
    %10 = vsyncpa [#allocation3], 0
    %11 = vsyncpa [#allocation6], 0
    %12 = vsyncpa [#allocation9], 0
    %13 = vsyncpa [#allocation4], 0
    // Predicated region
    $region2: #{tpu_custom_call.1} parent=1 // pred_check
      _
    $region3: #{tpu_custom_call.1} parent=1 // pred_check_branch
      %15 = sbr.rel (0) target = $region5
    $region4: #{tpu_custom_call.1} parent=1 // pred_region
      %s17 = ssub.s32 128, 128
      %18 = vsyncadd [#allocation3], %s17
      %s20 = sshll.u32 [#allocation2], 4
      %s21 = int_to_ptr.vmem [resolvable:$true] %s20
      %23 = dma.hbm_to_vmem [thread:$0]  %s0, 128, %s21, [#allocation3]
    $region5: #{tpu_custom_call.1} parent=1 // pred_fallthru
      _
    // Predicated region
    $region6: #{tpu_custom_call.1} parent=1 // pred_check
      _
    $region7: #{tpu_custom_call.1} parent=1 // pred_check_branch
      %25 = sbr.rel (0) target = $region9
    $region8: #{tpu_custom_call.1} parent=1 // pred_region
      %s27 = ssub.s32 128, 128
      %28 = vsyncadd [#allocation6], %s27
      %s30 = sshll.u32 [#allocation5], 4
      %s31 = int_to_ptr.vmem [resolvable:$true] %s30
      %33 = dma.hbm_to_vmem [thread:$0]  %s1, 128, %s31, [#allocation6]
    $region9: #{tpu_custom_call.1} parent=1 // pred_fallthru
      _
    // Predicated region
    $region10: #{tpu_custom_call.1} parent=1 // pred_check
      _
    $region11: #{tpu_custom_call.1} parent=1 // pred_check_branch
      %35 = sbr.rel (0) target = $region13
    $region12: #{tpu_custom_call.1} parent=1 // pred_region
      %s37 = ssub.s32 128, 128
      %38 = vsyncadd [#allocation6], %s37
      %s39 = sshll.u32 [#allocation7], 4
      %s40 = int_to_ptr.vmem [resolvable:$true] %s39
      %45 = dma.hbm_to_vmem [thread:$0]  %s2, 128, %s40, [#allocation6], 32, 32, 2
    $region13: #{tpu_custom_call.1} parent=1 // pred_fallthru
      _
    // Predicated region
    $region14: #{tpu_custom_call.1} parent=1 // pred_check
      _
    $region15: #{tpu_custom_call.1} parent=1 // pred_check_branch
      %47 = sbr.rel (0) target = $region17
    $region16: #{tpu_custom_call.1} parent=1 // pred_region
      _
    $region17: #{tpu_custom_call.1} parent=1 // pred_fallthru
      _
    // Predicated region
    $region18: #{tpu_custom_call.1} parent=1 // pred_check
      _
    $region19: #{tpu_custom_call.1} parent=1 // pred_check_branch
      %49 = sbr.rel (0) target = $region21
    $region20: #{tpu_custom_call.1} parent=1 // pred_region
      %s51 = ssub.s32 128, 128
      %52 = vsyncadd [#allocation9], %s51
      %s54 = sshll.u32 [#allocation8], 4
      %s55 = int_to_ptr.vmem [resolvable:$true] %s54
      %57 = dma.hbm_to_vmem [thread:$0]  %s4, 128, %s55, [#allocation9]
    $region21: #{tpu_custom_call.1} parent=1 // pred_fallthru
      _
    // Predicated region
    $region22: #{tpu_custom_call.1} parent=1 // pred_check
      _
    $region23: #{tpu_custom_call.1} parent=1 // pred_check_branch
      %59 = sbr.rel (0) target = $region25
    $region24: #{tpu_custom_call.1} parent=1 // pred_region
      %60 = dma.done [#allocation3], 128
    $region25: #{tpu_custom_call.1} parent=1 // pred_fallthru
      _
    // Predicated region
    $region26: #{tpu_custom_call.1} parent=1 // pred_check
      _
    $region27: #{tpu_custom_call.1} parent=1 // pred_check_branch
      %62 = sbr.rel (0) target = $region29
    $region28: #{tpu_custom_call.1} parent=1 // pred_region
      %63 = dma.done [#allocation6], 128
    $region29: #{tpu_custom_call.1} parent=1 // pred_fallthru
      _
    // Predicated region
    $region30: #{tpu_custom_call.1} parent=1 // pred_check
      _
    $region31: #{tpu_custom_call.1} parent=1 // pred_check_branch
      %65 = sbr.rel (0) target = $region33
    $region32: #{tpu_custom_call.1} parent=1 // pred_region
      %66 = dma.done [#allocation6], 128
    $region33: #{tpu_custom_call.1} parent=1 // pred_fallthru
      _
    // Predicated region
    $region34: #{tpu_custom_call.1} parent=1 // pred_check
      _
    $region35: #{tpu_custom_call.1} parent=1 // pred_check_branch
      %68 = sbr.rel (0) target = $region37
    $region36: #{tpu_custom_call.1} parent=1 // pred_region
      %69 = dma.done [#allocation9], 128
    $region37: #{tpu_custom_call.1} parent=1 // pred_fallthru
      _
    %v70 = vld [vmem:[#allocation2] sm:$0x3f]
    %v71 = vld [vmem:[#allocation5] sm:$0x3f]
    %v72 = vsub.f32 %v70, %v71
    %v73 = vld [vmem:[#allocation8] sm:$0xff]
    %vm74 = vcmask 64512
    %v76 = vsel %vm74, %v72, 0
    %78 = vmatprep.subr.mxu0 0.0
    %v79 = vand.u32 %v73, 4294901760
    %80 = vmatpush1.msra.mxu0 %v79
    %81 = vmatprep.subr.mxu0 0.0
    %82 = vmatpush1.msra.mxu0 0.0
    %83 = vmatprep.subr.mxu0 0.0
    %84 = vmatpush1.msra.mxu0 0.0
    %85 = vmatprep.subr.mxu0 0.0
    %86 = vmatpush1.msra.mxu0 0.0
    %87 = vmatprep.subr.mxu0 0.0
    %88 = vmatpush1.msra.mxu0 0.0
    %89 = vmatprep.subr.mxu0 0.0
    %90 = vmatpush1.msra.mxu0 0.0
    %91 = vmatprep.subr.mxu0 0.0
    %92 = vmatpush1.msra.mxu0 0.0
    %93 = vmatprep.subr.mxu0 0.0
    %94 = vmatpush1.msra.mxu0 0.0
    %95 = vmatprep.subr.mxu0 0.0
    %96 = vmatpush1.msra.mxu0 0.0
    %97 = vmatprep.subr.mxu0 0.0
    %98 = vmatpush1.msra.mxu0 0.0
    %99 = vmatprep.subr.mxu0 0.0
    %100 = vmatpush1.msra.mxu0 0.0
    %101 = vmatprep.subr.mxu0 0.0
    %102 = vmatpush1.msra.mxu0 0.0
    %103 = vmatprep.subr.mxu0 0.0
    %104 = vmatpush1.msra.mxu0 0.0
    %105 = vmatprep.subr.mxu0 0.0
    %106 = vmatpush1.msra.mxu0 0.0
    %107 = vmatprep.subr.mxu0 0.0
    %108 = vmatpush1.msra.mxu0 0.0
    %109 = vmatprep.subr.mxu0 0.0
    %110 = vmatpush1.msra.mxu0 0.0
    %111 = vmatprep.subr.mxu0 0.0
    %112 = vmatpush1.msra.mxu0 0.0
    %113 = vmatprep.subr.mxu0 0.0
    %114 = vmatpush1.msra.mxu0 0.0
    %115 = vmatprep.subr.mxu0 0.0
    %116 = vmatpush1.msra.mxu0 0.0
    %117 = vmatprep.subr.mxu0 0.0
    %118 = vmatpush1.msra.mxu0 0.0
    %119 = vmatprep.subr.mxu0 0.0
    %120 = vmatpush1.msra.mxu0 0.0
    %121 = vmatprep.subr.mxu0 0.0
    %122 = vmatpush1.msra.mxu0 0.0
    %123 = vmatprep.subr.mxu0 0.0
    %124 = vmatpush1.msra.mxu0 0.0
    %125 = vmatprep.subr.mxu0 0.0
    %126 = vmatpush1.msra.mxu0 0.0
    %127 = vmatprep.subr.mxu0 0.0
    %128 = vmatpush1.msra.mxu0 0.0
    %129 = vmatprep.subr.mxu0 0.0
    %130 = vmatpush1.msra.mxu0 0.0
    %131 = vmatprep.subr.mxu0 0.0
    %132 = vmatpush1.msra.mxu0 0.0
    %133 = vmatprep.subr.mxu0 0.0
    %134 = vmatpush1.msra.mxu0 0.0
    %135 = vmatprep.subr.mxu0 0.0
    %136 = vmatpush1.msra.mxu0 0.0
    %137 = vmatprep.subr.mxu0 0.0
    %138 = vmatpush1.msra.mxu0 0.0
    %139 = vmatprep.subr.mxu0 0.0
    %140 = vmatpush1.msra.mxu0 0.0
    %141 = vmatprep.subr.mxu0 0.0
    %142 = vmatpush1.msra.mxu0 0.0
    %143 = vmatprep.mubr.f32.mxu0 0.0
    %v144 = vand.u32 %v76, 4294901760
    %v145 = vsub.f32 %v76, %v144
    %v146 = vand.u32 %v145, 4294901760
    %v147 = vsub.f32 %v145, %v146
    %v148 = vand.u32 %v147, 4294901760
    %149 = vmatmul.mubr.f32.gmra.mrb[0].mxu0 %v148
    %v150 = vpop.f32.mrb[0].mxu0
    %v151 = vadd.f32 0.0, %v150
    %v152 = vpop.f32.mrb[0].mxu0
    %153 = vdwg.mxu0
    %154 = vmatprep.subr.mxu0 0.0
    %v155 = vand.u32 %v73, 4294901760
    %v156 = vsub.f32 %v73, %v155
    %v157 = vand.u32 %v156, 4294901760
    %v158 = vsub.f32 %v156, %v157
    %v159 = vand.u32 %v158, 4294901760
    %160 = vmatpush1.msra.mxu0 %v159
    %161 = vmatprep.subr.mxu0 0.0
    %162 = vmatpush1.msra.mxu0 0.0
    %163 = vmatprep.subr.mxu0 0.0
    %164 = vmatpush1.msra.mxu0 0.0
    %165 = vmatprep.subr.mxu0 0.0
    %166 = vmatpush1.msra.mxu0 0.0
    %167 = vmatprep.subr.mxu0 0.0
    %168 = vmatpush1.msra.mxu0 0.0
    %169 = vmatprep.subr.mxu0 0.0
    %170 = vmatpush1.msra.mxu0 0.0
    %171 = vmatprep.subr.mxu0 0.0
    %172 = vmatpush1.msra.mxu0 0.0
    %173 = vmatprep.subr.mxu0 0.0
    %174 = vmatpush1.msra.mxu0 0.0
    %175 = vmatprep.subr.mxu0 0.0
    %176 = vmatpush1.msra.mxu0 0.0
    %177 = vmatprep.subr.mxu0 0.0
    %178 = vmatpush1.msra.mxu0 0.0
    %179 = vmatprep.subr.mxu0 0.0
    %180 = vmatpush1.msra.mxu0 0.0
    %181 = vmatprep.subr.mxu0 0.0
    %182 = vmatpush1.msra.mxu0 0.0
    %183 = vmatprep.subr.mxu0 0.0
    %184 = vmatpush1.msra.mxu0 0.0
    %185 = vmatprep.subr.mxu0 0.0
    %186 = vmatpush1.msra.mxu0 0.0
    %187 = vmatprep.subr.mxu0 0.0
    %188 = vmatpush1.msra.mxu0 0.0
    %189 = vmatprep.subr.mxu0 0.0
    %190 = vmatpush1.msra.mxu0 0.0
    %191 = vmatprep.subr.mxu0 0.0
    %192 = vmatpush1.msra.mxu0 0.0
    %193 = vmatprep.subr.mxu0 0.0
    %194 = vmatpush1.msra.mxu0 0.0
    %195 = vmatprep.subr.mxu0 0.0
    %196 = vmatpush1.msra.mxu0 0.0
    %197 = vmatprep.subr.mxu0 0.0
    %198 = vmatpush1.msra.mxu0 0.0
    %199 = vmatprep.subr.mxu0 0.0
    %200 = vmatpush1.msra.mxu0 0.0
    %201 = vmatprep.subr.mxu0 0.0
    %202 = vmatpush1.msra.mxu0 0.0
    %203 = vmatprep.subr.mxu0 0.0
    %204 = vmatpush1.msra.mxu0 0.0
    %205 = vmatprep.subr.mxu0 0.0
    %206 = vmatpush1.msra.mxu0 0.0
    %207 = vmatprep.subr.mxu0 0.0
    %208 = vmatpush1.msra.mxu0 0.0
    %209 = vmatprep.subr.mxu0 0.0
    %210 = vmatpush1.msra.mxu0 0.0
    %211 = vmatprep.subr.mxu0 0.0
    %212 = vmatpush1.msra.mxu0 0.0
    %213 = vmatprep.subr.mxu0 0.0
    %214 = vmatpush1.msra.mxu0 0.0
    %215 = vmatprep.subr.mxu0 0.0
    %216 = vmatpush1.msra.mxu0 0.0
    %217 = vmatprep.subr.mxu0 0.0
    %218 = vmatpush1.msra.mxu0 0.0
    %219 = vmatprep.subr.mxu0 0.0
    %220 = vmatpush1.msra.mxu0 0.0
    %221 = vmatprep.subr.mxu0 0.0
    %222 = vmatpush1.msra.mxu0 0.0
    %223 = vmatprep.mubr.f32.mxu0 0.0
    %v224 = vand.u32 %v76, 4294901760
    %225 = vmatmul.mubr.f32.gmra.mrb[0].mxu0 %v224
    %v226 = vpop.f32.mrb[0].mxu0
    %v227 = vadd.f32 %v151, %v226
    %v228 = vpop.f32.mrb[0].mxu0
    %229 = vdwg.mxu0
    %230 = vmatprep.subr.mxu0 0.0
    %v231 = vand.u32 %v73, 4294901760
    %v232 = vsub.f32 %v73, %v231
    %233 = vmatpush1.msra.mxu0 %v232
    %234 = vmatprep.subr.mxu0 0.0
    %235 = vmatpush1.msra.mxu0 0.0
    %236 = vmatprep.subr.mxu0 0.0
    %237 = vmatpush1.msra.mxu0 0.0
    %238 = vmatprep.subr.mxu0 0.0
    %239 = vmatpush1.msra.mxu0 0.0
    %240 = vmatprep.subr.mxu0 0.0
    %241 = vmatpush1.msra.mxu0 0.0
    %242 = vmatprep.subr.mxu0 0.0
    %243 = vmatpush1.msra.mxu0 0.0
    %244 = vmatprep.subr.mxu0 0.0
    %245 = vmatpush1.msra.mxu0 0.0
    %246 = vmatprep.subr.mxu0 0.0
    %247 = vmatpush1.msra.mxu0 0.0
    %248 = vmatprep.subr.mxu0 0.0
    %249 = vmatpush1.msra.mxu0 0.0
    %250 = vmatprep.subr.mxu0 0.0
    %251 = vmatpush1.msra.mxu0 0.0
    %252 = vmatprep.subr.mxu0 0.0
    %253 = vmatpush1.msra.mxu0 0.0
    %254 = vmatprep.subr.mxu0 0.0
    %255 = vmatpush1.msra.mxu0 0.0
    %256 = vmatprep.subr.mxu0 0.0
    %257 = vmatpush1.msra.mxu0 0.0
    %258 = vmatprep.subr.mxu0 0.0
    %259 = vmatpush1.msra.mxu0 0.0
    %260 = vmatprep.subr.mxu0 0.0
    %261 = vmatpush1.msra.mxu0 0.0
    %262 = vmatprep.subr.mxu0 0.0
    %263 = vmatpush1.msra.mxu0 0.0
    %264 = vmatprep.subr.mxu0 0.0
    %265 = vmatpush1.msra.mxu0 0.0
    %266 = vmatprep.subr.mxu0 0.0
    %267 = vmatpush1.msra.mxu0 0.0
    %268 = vmatprep.subr.mxu0 0.0
    %269 = vmatpush1.msra.mxu0 0.0
    %270 = vmatprep.subr.mxu0 0.0
    %271 = vmatpush1.msra.mxu0 0.0
    %272 = vmatprep.subr.mxu0 0.0
    %273 = vmatpush1.msra.mxu0 0.0
    %274 = vmatprep.subr.mxu0 0.0
    %275 = vmatpush1.msra.mxu0 0.0
    %276 = vmatprep.subr.mxu0 0.0
    %277 = vmatpush1.msra.mxu0 0.0
    %278 = vmatprep.subr.mxu0 0.0
    %279 = vmatpush1.msra.mxu0 0.0
    %280 = vmatprep.subr.mxu0 0.0
    %281 = vmatpush1.msra.mxu0 0.0
    %282 = vmatprep.subr.mxu0 0.0
    %283 = vmatpush1.msra.mxu0 0.0
    %284 = vmatprep.subr.mxu0 0.0
    %285 = vmatpush1.msra.mxu0 0.0
    %286 = vmatprep.subr.mxu0 0.0
    %287 = vmatpush1.msra.mxu0 0.0
    %288 = vmatprep.subr.mxu0 0.0
    %289 = vmatpush1.msra.mxu0 0.0
    %290 = vmatprep.subr.mxu0 0.0
    %291 = vmatpush1.msra.mxu0 0.0
    %292 = vmatprep.subr.mxu0 0.0
    %293 = vmatpush1.msra.mxu0 0.0
    %294 = vmatprep.subr.mxu0 0.0
    %295 = vmatpush1.msra.mxu0 0.0
    %296 = vmatprep.mubr.f32.mxu0 0.0
    %v297 = vand.u32 %v76, 4294901760
    %v298 = vsub.f32 %v76, %v297
    %299 = vmatmul.mubr.f32.gmra.mrb[0].mxu0 %v298
    %v300 = vpop.f32.mrb[0].mxu0
    %v301 = vadd.f32 %v227, %v300
    %v302 = vpop.f32.mrb[0].mxu0
    %303 = vdwg.mxu0
    %304 = vmatprep.subr.mxu0 0.0
    %v305 = vand.u32 %v73, 4294901760
    %306 = vmatpush1.msra.mxu0 %v305
    %307 = vmatprep.subr.mxu0 0.0
    %308 = vmatpush1.msra.mxu0 0.0
    %309 = vmatprep.subr.mxu0 0.0
    %310 = vmatpush1.msra.mxu0 0.0
    %311 = vmatprep.subr.mxu0 0.0
    %312 = vmatpush1.msra.mxu0 0.0
    %313 = vmatprep.subr.mxu0 0.0
    %314 = vmatpush1.msra.mxu0 0.0
    %315 = vmatprep.subr.mxu0 0.0
    %316 = vmatpush1.msra.mxu0 0.0
    %317 = vmatprep.subr.mxu0 0.0
    %318 = vmatpush1.msra.mxu0 0.0
    %319 = vmatprep.subr.mxu0 0.0
    %320 = vmatpush1.msra.mxu0 0.0
    %321 = vmatprep.subr.mxu0 0.0
    %322 = vmatpush1.msra.mxu0 0.0
    %323 = vmatprep.subr.mxu0 0.0
    %324 = vmatpush1.msra.mxu0 0.0
    %325 = vmatprep.subr.mxu0 0.0
    %326 = vmatpush1.msra.mxu0 0.0
    %327 = vmatprep.subr.mxu0 0.0
    %328 = vmatpush1.msra.mxu0 0.0
    %329 = vmatprep.subr.mxu0 0.0
    %330 = vmatpush1.msra.mxu0 0.0
    %331 = vmatprep.subr.mxu0 0.0
    %332 = vmatpush1.msra.mxu0 0.0
    %333 = vmatprep.subr.mxu0 0.0
    %334 = vmatpush1.msra.mxu0 0.0
    %335 = vmatprep.subr.mxu0 0.0
    %336 = vmatpush1.msra.mxu0 0.0
    %337 = vmatprep.subr.mxu0 0.0
    %338 = vmatpush1.msra.mxu0 0.0
    %339 = vmatprep.subr.mxu0 0.0
    %340 = vmatpush1.msra.mxu0 0.0
    %341 = vmatprep.subr.mxu0 0.0
    %342 = vmatpush1.msra.mxu0 0.0
    %343 = vmatprep.subr.mxu0 0.0
    %344 = vmatpush1.msra.mxu0 0.0
    %345 = vmatprep.subr.mxu0 0.0
    %346 = vmatpush1.msra.mxu0 0.0
    %347 = vmatprep.subr.mxu0 0.0
    %348 = vmatpush1.msra.mxu0 0.0
    %349 = vmatprep.subr.mxu0 0.0
    %350 = vmatpush1.msra.mxu0 0.0
    %351 = vmatprep.subr.mxu0 0.0
    %352 = vmatpush1.msra.mxu0 0.0
    %353 = vmatprep.subr.mxu0 0.0
    %354 = vmatpush1.msra.mxu0 0.0
    %355 = vmatprep.subr.mxu0 0.0
    %356 = vmatpush1.msra.mxu0 0.0
    %357 = vmatprep.subr.mxu0 0.0
    %358 = vmatpush1.msra.mxu0 0.0
    %359 = vmatprep.subr.mxu0 0.0
    %360 = vmatpush1.msra.mxu0 0.0
    %361 = vmatprep.subr.mxu0 0.0
    %362 = vmatpush1.msra.mxu0 0.0
    %363 = vmatprep.subr.mxu0 0.0
    %364 = vmatpush1.msra.mxu0 0.0
    %365 = vmatprep.subr.mxu0 0.0
    %366 = vmatpush1.msra.mxu0 0.0
    %367 = vmatprep.subr.mxu0 0.0
    %368 = vmatpush1.msra.mxu0 0.0
    %369 = vmatprep.mubr.f32.mxu0 0.0
    %v370 = vand.u32 %v76, 4294901760
    %v371 = vsub.f32 %v76, %v370
    %v372 = vand.u32 %v371, 4294901760
    %373 = vmatmul.mubr.f32.gmra.mrb[0].mxu0 %v372
    %v374 = vpop.f32.mrb[0].mxu0
    %v375 = vadd.f32 %v301, %v374
    %v376 = vpop.f32.mrb[0].mxu0
    %377 = vdwg.mxu0
    %378 = vmatprep.subr.mxu0 0.0
    %v379 = vand.u32 %v73, 4294901760
    %v380 = vsub.f32 %v73, %v379
    %v381 = vand.u32 %v380, 4294901760
    %382 = vmatpush1.msra.mxu0 %v381
    %383 = vmatprep.subr.mxu0 0.0
    %384 = vmatpush1.msra.mxu0 0.0
    %385 = vmatprep.subr.mxu0 0.0
    %386 = vmatpush1.msra.mxu0 0.0
    %387 = vmatprep.subr.mxu0 0.0
    %388 = vmatpush1.msra.mxu0 0.0
    %389 = vmatprep.subr.mxu0 0.0
    %390 = vmatpush1.msra.mxu0 0.0
    %391 = vmatprep.subr.mxu0 0.0
    %392 = vmatpush1.msra.mxu0 0.0
    %393 = vmatprep.subr.mxu0 0.0
    %394 = vmatpush1.msra.mxu0 0.0
    %395 = vmatprep.subr.mxu0 0.0
    %396 = vmatpush1.msra.mxu0 0.0
    %397 = vmatprep.subr.mxu0 0.0
    %398 = vmatpush1.msra.mxu0 0.0
    %399 = vmatprep.subr.mxu0 0.0
    %400 = vmatpush1.msra.mxu0 0.0
    %401 = vmatprep.subr.mxu0 0.0
    %402 = vmatpush1.msra.mxu0 0.0
    %403 = vmatprep.subr.mxu0 0.0
    %404 = vmatpush1.msra.mxu0 0.0
    %405 = vmatprep.subr.mxu0 0.0
    %406 = vmatpush1.msra.mxu0 0.0
    %407 = vmatprep.subr.mxu0 0.0
    %408 = vmatpush1.msra.mxu0 0.0
    %409 = vmatprep.subr.mxu0 0.0
    %410 = vmatpush1.msra.mxu0 0.0
    %411 = vmatprep.subr.mxu0 0.0
    %412 = vmatpush1.msra.mxu0 0.0
    %413 = vmatprep.subr.mxu0 0.0
    %414 = vmatpush1.msra.mxu0 0.0
    %415 = vmatprep.subr.mxu0 0.0
    %416 = vmatpush1.msra.mxu0 0.0
    %417 = vmatprep.subr.mxu0 0.0
    %418 = vmatpush1.msra.mxu0 0.0
    %419 = vmatprep.subr.mxu0 0.0
    %420 = vmatpush1.msra.mxu0 0.0
    %421 = vmatprep.subr.mxu0 0.0
    %422 = vmatpush1.msra.mxu0 0.0
    %423 = vmatprep.subr.mxu0 0.0
    %424 = vmatpush1.msra.mxu0 0.0
    %425 = vmatprep.subr.mxu0 0.0
    %426 = vmatpush1.msra.mxu0 0.0
    %427 = vmatprep.subr.mxu0 0.0
    %428 = vmatpush1.msra.mxu0 0.0
    %429 = vmatprep.subr.mxu0 0.0
    %430 = vmatpush1.msra.mxu0 0.0
    %431 = vmatprep.subr.mxu0 0.0
    %432 = vmatpush1.msra.mxu0 0.0
    %433 = vmatprep.subr.mxu0 0.0
    %434 = vmatpush1.msra.mxu0 0.0
    %435 = vmatprep.subr.mxu0 0.0
    %436 = vmatpush1.msra.mxu0 0.0
    %437 = vmatprep.subr.mxu0 0.0
    %438 = vmatpush1.msra.mxu0 0.0
    %439 = vmatprep.subr.mxu0 0.0
    %440 = vmatpush1.msra.mxu0 0.0
    %441 = vmatprep.subr.mxu0 0.0
    %442 = vmatpush1.msra.mxu0 0.0
    %443 = vmatprep.subr.mxu0 0.0
    %444 = vmatpush1.msra.mxu0 0.0
    %445 = vmatprep.mubr.f32.mxu0 0.0
    %v446 = vand.u32 %v76, 4294901760
    %447 = vmatmul.mubr.f32.gmra.mrb[0].mxu0 %v446
    %v448 = vpop.f32.mrb[0].mxu0
    %v449 = vadd.f32 %v375, %v448
    %v450 = vpop.f32.mrb[0].mxu0
    %451 = vdwg.mxu0
    %452 = vmatprep.subr.mxu0 0.0
    %v453 = vand.u32 %v73, 4294901760
    %454 = vmatpush1.msra.mxu0 %v453
    %455 = vmatprep.subr.mxu0 0.0
    %456 = vmatpush1.msra.mxu0 0.0
    %457 = vmatprep.subr.mxu0 0.0
    %458 = vmatpush1.msra.mxu0 0.0
    %459 = vmatprep.subr.mxu0 0.0
    %460 = vmatpush1.msra.mxu0 0.0
    %461 = vmatprep.subr.mxu0 0.0
    %462 = vmatpush1.msra.mxu0 0.0
    %463 = vmatprep.subr.mxu0 0.0
    %464 = vmatpush1.msra.mxu0 0.0
    %465 = vmatprep.subr.mxu0 0.0
    %466 = vmatpush1.msra.mxu0 0.0
    %467 = vmatprep.subr.mxu0 0.0
    %468 = vmatpush1.msra.mxu0 0.0
    %469 = vmatprep.subr.mxu0 0.0
    %470 = vmatpush1.msra.mxu0 0.0
    %471 = vmatprep.subr.mxu0 0.0
    %472 = vmatpush1.msra.mxu0 0.0
    %473 = vmatprep.subr.mxu0 0.0
    %474 = vmatpush1.msra.mxu0 0.0
    %475 = vmatprep.subr.mxu0 0.0
    %476 = vmatpush1.msra.mxu0 0.0
    %477 = vmatprep.subr.mxu0 0.0
    %478 = vmatpush1.msra.mxu0 0.0
    %479 = vmatprep.subr.mxu0 0.0
    %480 = vmatpush1.msra.mxu0 0.0
    %481 = vmatprep.subr.mxu0 0.0
    %482 = vmatpush1.msra.mxu0 0.0
    %483 = vmatprep.subr.mxu0 0.0
    %484 = vmatpush1.msra.mxu0 0.0
    %485 = vmatprep.subr.mxu0 0.0
    %486 = vmatpush1.msra.mxu0 0.0
    %487 = vmatprep.subr.mxu0 0.0
    %488 = vmatpush1.msra.mxu0 0.0
    %489 = vmatprep.subr.mxu0 0.0
    %490 = vmatpush1.msra.mxu0 0.0
    %491 = vmatprep.subr.mxu0 0.0
    %492 = vmatpush1.msra.mxu0 0.0
    %493 = vmatprep.subr.mxu0 0.0
    %494 = vmatpush1.msra.mxu0 0.0
    %495 = vmatprep.subr.mxu0 0.0
    %496 = vmatpush1.msra.mxu0 0.0
    %497 = vmatprep.subr.mxu0 0.0
    %498 = vmatpush1.msra.mxu0 0.0
    %499 = vmatprep.subr.mxu0 0.0
    %500 = vmatpush1.msra.mxu0 0.0
    %501 = vmatprep.subr.mxu0 0.0
    %502 = vmatpush1.msra.mxu0 0.0
    %503 = vmatprep.subr.mxu0 0.0
    %504 = vmatpush1.msra.mxu0 0.0
    %505 = vmatprep.subr.mxu0 0.0
    %506 = vmatpush1.msra.mxu0 0.0
    %507 = vmatprep.subr.mxu0 0.0
    %508 = vmatpush1.msra.mxu0 0.0
    %509 = vmatprep.subr.mxu0 0.0
    %510 = vmatpush1.msra.mxu0 0.0
    %511 = vmatprep.subr.mxu0 0.0
    %512 = vmatpush1.msra.mxu0 0.0
    %513 = vmatprep.subr.mxu0 0.0
    %514 = vmatpush1.msra.mxu0 0.0
    %515 = vmatprep.subr.mxu0 0.0
    %516 = vmatpush1.msra.mxu0 0.0
    %517 = vmatprep.mubr.f32.mxu0 0.0
    %v518 = vand.u32 %v76, 4294901760
    %519 = vmatmul.mubr.f32.gmra.mrb[0].mxu0 %v518
    %v520 = vpop.f32.mrb[0].mxu0
    %v521 = vadd.f32 %v449, %v520
    %v522 = vpop.f32.mrb[0].mxu0
    %523 = vdwg.mxu0
    %v524 = vmul.f32 %v72, %v72
    %v525 = vmul.f32 %v524, 0.020833334
    %v526 = vmul.f32 %v521, %v521
    %v527 = vmul.f32 %v526, 0.004166667
    %v528 = vadd.f32 %v525, %v527
    %vm529 = vcmask 62464
    %v530 = vsel %vm529, %v528, 0.0
    %531 = vadd.xlane.f32.xlu0 %v530
    %v532 = vpop.xlane.xlu0 %531
    %v533 = vrot.slane %v532, 4
    %v534 = vadd.f32 %v532, %v533
    %v535 = vrot.slane %v534, 2
    %v536 = vadd.f32 %v534, %v535
    %v537 = vrot.slane %v536, 1
    %v538 = vadd.f32 %v536, %v537
    %s539 = vtos %v538
    %v540 = vld [vmem:[#allocation7] sm:$0x3]
    %v541 = vld [vmem:[#allocation7 + $0x2] sm:$0x3]
    %v542 = vld [vmem:[#allocation7 + $0x4] sm:$0x3]
    %v543 = vld [vmem:[#allocation7 + $0x6] sm:$0x3]
    %v544 = vld [vmem:[%s3] sm:$0x3]
    %v545 = vld [vmem:[%s3 + $0x2] sm:$0x3]
    %v546 = vld [vmem:[%s3 + $0x4] sm:$0x3]
    %v547 = vld [vmem:[%s3 + $0x6] sm:$0x3]
    %v548 = vmul.f32 %v540, %v540
    %v549 = vmul.f32 %v544, %v544
    %v550 = vmul.f32 %v540, %v544
    %v551 = vmul.f32 %v541, %v541
    %v552 = vadd.f32 %v548, %v551
    %v553 = vmul.f32 %v545, %v545
    %v554 = vadd.f32 %v549, %v553
    %v555 = vmul.f32 %v541, %v545
    %v556 = vadd.f32 %v550, %v555
    %v557 = vmul.f32 %v542, %v542
    %v558 = vadd.f32 %v552, %v557
    %v559 = vmul.f32 %v546, %v546
    %v560 = vadd.f32 %v554, %v559
    %v561 = vmul.f32 %v542, %v546
    %v562 = vadd.f32 %v556, %v561
    %v563 = vmul.f32 %v543, %v543
    %v564 = vadd.f32 %v558, %v563
    %v565 = vmul.f32 %v547, %v547
    %v566 = vadd.f32 %v560, %v565
    %v567 = vmul.f32 %v543, %v547
    %v568 = vadd.f32 %v562, %v567
    %v569 = vmax.f32 %v564, 1e-24
    %v570 = vrsqrt.pop %v569
    %v571 = vmax.f32 %v566, 1e-24
    %v572 = vrsqrt.pop %v571
    %v573 = vmul.f32 %v568, %v570
    %v574 = vmul.f32 %v573, %v572
    %v575 = vmax.f32 %v574, -1.0
    %v576 = vmin.f32 %v575, 1.0
    %v577 = vand.u32 2147483647, %v576
    %v578 = vsub.f32 1.0, %v577
    %vm579 = vcmask 58368
    %v580 = vsel %vm579, %v578, 0.0
    %581 = vadd.xlane.f32.xlu0 %v580
    %v582 = vpop.xlane.xlu0 %581
    %v583 = vrot.slane %v582, 4
    %v584 = vadd.f32 %v582, %v583
    %v585 = vrot.slane %v584, 2
    %v586 = vadd.f32 %v584, %v585
    %v587 = vrot.slane %v586, 1
    %v588 = vadd.f32 %v586, %v587
    %s589 = vtos %v588
    %s590 = smul.f32 %s589, 0.0625
    %s591 = sadd.f32 %s539, %s590
    %v592 = vld [vmem:[#allocation2] sm:$0x3]
    %v593 = vmul.f32 %v592, 2.0
    %595 = vrot.lane.b32.xlu0 %v593, 1
    %v596 = vpop.permute.xlu0 %595
    %v598 = vsub.f32 %v592, %v596
    %600 = vrot.lane.b32.xlu0 %v592, 2
    %v601 = vpop.permute.xlu0 %600
    %v603 = vadd.f32 %v598, %v601
    %v604 = vmul.f32 %v603, %v603
    %v605 = vld [vmem:[#allocation2 + $0x2] sm:$0x3]
    %v606 = vmul.f32 %v605, 2.0
    %608 = vrot.lane.b32.xlu0 %v606, 1
    %v609 = vpop.permute.xlu0 %608
    %v611 = vsub.f32 %v605, %v609
    %613 = vrot.lane.b32.xlu0 %v605, 2
    %v614 = vpop.permute.xlu0 %613
    %v616 = vadd.f32 %v611, %v614
    %v617 = vmul.f32 %v616, %v616
    %v618 = vadd.f32 %v604, %v617
    %v619 = vld [vmem:[#allocation2 + $0x4] sm:$0x3]
    %v620 = vmul.f32 %v619, 2.0
    %622 = vrot.lane.b32.xlu0 %v620, 1
    %v623 = vpop.permute.xlu0 %622
    %v625 = vsub.f32 %v619, %v623
    %627 = vrot.lane.b32.xlu0 %v619, 2
    %v628 = vpop.permute.xlu0 %627
    %v630 = vadd.f32 %v625, %v628
    %v631 = vmul.f32 %v630, %v630
    %v632 = vadd.f32 %v618, %v631
    %v633 = vrsqrt.pop %v632
    %v634 = vmul.f32 %v632, %v633
    %vm635 = vcmp.eq.f32.partialorder %v632, inf
    %v636 = vsel %vm635, %v632, %v634
    %vm637 = vcmp.eq.f32.partialorder %v632, 0.0
    %v638 = vand.u32 %v632, 2147483648
    %v639 = vsel %vm637, %v638, %v636
    %641 = vrot.lane.b32.xlu0 %v639, 126
    %v642 = vpop.permute.xlu0 %641
    %vm644 = vcmask 41984
    %v645 = vsel %vm644, %v642, 0.0
    %646 = vadd.xlane.f32.xlu0 %v645
    %v647 = vpop.xlane.xlu0 %646
    %v648 = vrot.slane %v647, 4
    %v649 = vadd.f32 %v647, %v648
    %v650 = vrot.slane %v649, 2
    %v651 = vadd.f32 %v649, %v650
    %v652 = vrot.slane %v651, 1
    %v653 = vadd.f32 %v651, %v652
    %s654 = vtos %v653
    %s655 = smul.f32 %s654, 0.008333334
    %s656 = sadd.f32 %s591, %s655
    %v657 = vsel %vm529, %v70, 0.0
    %658 = vadd.xlane.f32.xlu0 %v657
    %v659 = vpop.xlane.xlu0 %658
    %v660 = vmul.f32 %v659, 0.125
    %v661 = vsub.f32 %v70, %v660
    %v662 = vmul.f32 %v661, %v661
    %v663 = vsel %vm529, %v662, 0.0
    %664 = vadd.xlane.f32.xlu0 %v663
    %v665 = vpop.xlane.xlu0 %664
    %v666 = vmul.f32 %v665, 0.14285715
    %v667 = vrsqrt.pop %v666
    %v668 = vmul.f32 %v666, %v667
    %vm669 = vcmp.eq.f32.partialorder %v666, inf
    %v670 = vsel %vm669, %v666, %v668
    %vm671 = vcmp.eq.f32.partialorder %v666, 0.0
    %v672 = vand.u32 %v666, 2147483648
    %v673 = vsel %vm671, %v672, %v670
    %vm674 = vcmask 5120
    %v675 = vsel %vm674, %v673, 0.0
    %676 = vadd.xlane.f32.xlu0 %v675
    %v677 = vpop.xlane.xlu0 %676
    %v678 = vrot.slane %v677, 4
    %v679 = vadd.f32 %v677, %v678
    %v680 = vrot.slane %v679, 2
    %v681 = vadd.f32 %v679, %v680
    %v682 = vrot.slane %v681, 1
    %v683 = vadd.f32 %v681, %v682
    %s684 = vtos %v683
    %s685 = smul.f32 %s684, 0.16666667
    %s686 = sadd.f32 %s685, 1e-06
    %v687 = vstv %s686
    %v688 = vrcp.pop %v687
    %s689 = vtos %v688
    %s690 = smul.f32 0.05, %s689
    %s691 = sadd.f32 %s656, %s690
    %v692 = vstv %s691
    %vm693 = vcmask 0
    %694 = vst.msk [vmem:[#allocation10] sm:$0x1] %vm693, %v692
    // Predicated region
    $region38: #{tpu_custom_call.1} parent=1 // pred_check
      _
    $region39: #{tpu_custom_call.1} parent=1 // pred_check_branch
      %696 = sbr.rel (0) target = $region41
    $region40: #{tpu_custom_call.1} parent=1 // pred_region
      %s698 = ssub.s32 16, 16
      %699 = vsyncadd [#allocation4], %s698
      %s701 = sshll.u32 [#allocation10], 4
      %s702 = int_to_ptr.vmem [resolvable:$true] %s701
      %704 = dma.vmem_to_hbm [thread:$0]  %s702, 16, %s5, [#allocation4]
    $region41: #{tpu_custom_call.1} parent=1 // pred_fallthru
      _
    // Predicated region
    $region42: #{tpu_custom_call.1} parent=1 // pred_check
      _
    $region43: #{tpu_custom_call.1} parent=1 // pred_check_branch
      %706 = sbr.rel (0) target = $region45
    $region44: #{tpu_custom_call.1} parent=1 // pred_region
      %707 = dma.done [#allocation4], 16
    $region45: #{tpu_custom_call.1} parent=1 // pred_fallthru
      _
    %708 = vsyncpa [#allocation3], 1
    %709 = vsyncpa [#allocation6], 1
    %710 = vsyncpa [#allocation9], 1
    %711 = vsyncpa [#allocation4], 1

</llo_original>
